<compile_context>
chip_gen: v7x
topology: tpu7x:2x2x1
jax: 0.10.0
libtpu: 0.0.40
codegen_flags: <defaults>
</compile_context>

<pallas_src>
import functools
import math

import jax
import jax.numpy as jnp
from jax.experimental import pallas as pl
from jax.experimental.pallas import tpu as pltpu

# Lane pad target for the *resident* operands (conv-out channels / embedding).
# With real Inception channel counts (hundreds), pad to 256 on v6e/v7x to fill
# the 2x256x256 MXU; 128 is right for v5e and for this small stand-in.
LANE = 128
# Spatial rows per streamed tile.  512-2048 amortises the ~0.35us per-step
# overhead; double-buffered bf16 at true K this is only tens of KiB of VMEM,
# comfortable on v7x's 64 MiB as well as v5e/v6e's 128 MiB.
TS_MAX = 512


def _round_up(x, m):
    return ((x + m - 1) // m) * m


# ----------------------------------------------------------------------------
# Fused Pallas kernel: conv(matmul)+ReLU -> global avg pool -> FC head
# ----------------------------------------------------------------------------
def fused_conv_pool_fc_kernel(p_ref, wc_ref, bc_ref, wf_ref, bf_ref,
                              o_ref, acc_ref, ppad_ref, *,
                              s_real, leak_rows, ktrue):
    """Grid = (B, S_pad // ts); batch axis "parallel", spatial axis "arbitrary".

    p_ref   : [ts, Ktrue]   bf16  im2col patch tile (true K, batch squeezed)
    wc_ref  : [Kpad, Cpad]  bf16  conv weight (resident, constant index_map)
    bc_ref  : [1, Cpad]     f32   conv bias   (resident)
    wf_ref  : [Cpad, Epad]  f32   FC weight   (resident)
    bf_ref  : [1, Epad]     f32   FC bias     (resident)
    o_ref   : [8, Epad]     f32   per-batch output slab (row 0 = embedding)
    acc_ref : [8, Cpad]     f32   per-sublane-row channel-sum accumulator
    ppad_ref: [ts, Kpad]    bf16  lane-dense zero-extended patch operand
    """
    s = pl.program_id(1)
    ns = pl.num_programs(1)
    cpad = acc_ref.shape[-1]
    epad = o_ref.shape[-1]

    @pl.when(s == 0)
    def _():
        acc_ref[...] = jnp.zeros_like(acc_ref)
        # Zero once per batch so the padded K lanes (ktrue..Kpad) stay 0; only
        # the first `ktrue` lanes are ever overwritten below.
        ppad_ref[...] = jnp.zeros_like(ppad_ref)

    # Zero-extend the true-K patch tile into the lane-dense MXU operand.
    ppad_ref[:, :ktrue] = p_ref[...]

    # Conv as im2col matmul on the MXU (bf16 x bf16 -> f32 accumulation).
    feats = jnp.dot(ppad_ref[...], wc_ref[...],
                    preferred_element_type=jnp.float32)
    feats = jnp.maximum(feats + bc_ref[...], 0.0)            # bias + ReLU (f32)

    # Accumulate per-sublane-row partial channel sums: plain VPU vadds (the
    # cross-sublane 8->1 XLU reduce happens once, in the finalize step).
    acc_ref[...] += jnp.sum(feats.reshape(-1, 8, cpad), axis=0)

    @pl.when(s == ns - 1)
    def _():
        ch_sum = jnp.sum(acc_ref[...], axis=0, keepdims=True)   # [1, Cpad]
        if leak_rows:  # static: each zero-padded spatial row contributed relu(b)
            ch_sum = ch_sum - float(leak_rows) * jnp.maximum(bc_ref[...], 0.0)
        pooled = ch_sum * (1.0 / s_real)                         # global avg pool
        emb = jnp.dot(pooled, wf_ref[...],
                      preferred_element_type=jnp.float32) + bf_ref[...]
        o_ref[...] = jnp.broadcast_to(emb, (8, epad)).astype(o_ref.dtype)


def _fused_conv_pool_fc(patches, conv_w, conv_b, fc_w, fc_b, *, s_real, ts):
    B, s_pad, ktrue = patches.shape
    kpad, cpad = conv_w.shape
    epad = fc_w.shape[1]
    ns = s_pad // ts
    leak_rows = s_pad - s_real

    kernel = functools.partial(fused_conv_pool_fc_kernel,
                               s_real=s_real, leak_rows=leak_rows, ktrue=ktrue)
    out = pl.pallas_call(
        kernel,
        out_shape=jax.ShapeDtypeStruct((B, 8, epad), jnp.float32),
        grid_spec=pltpu.PrefetchScalarGridSpec(
            num_scalar_prefetch=0,
            grid=(B, ns),
            in_specs=[
                # streamed patch tiles at TRUE K: double-buffered HBM->VMEM.
                # (If a DMA gap remains in the trace, pipeline_mode=pl.Buffered(3)
                #  on this spec only is the cheap next step.)
                pl.BlockSpec((None, ts, ktrue), lambda b, s: (b, s, 0)),
                # weights / biases: constant index_map -> DMA'd once, resident
                pl.BlockSpec((kpad, cpad), lambda b, s: (0, 0)),
                pl.BlockSpec((1, cpad), lambda b, s: (0, 0)),
                pl.BlockSpec((cpad, epad), lambda b, s: (0, 0)),
                pl.BlockSpec((1, epad), lambda b, s: (0, 0)),
            ],
            # Per-batch output block (disjoint across the parallel batch axis,
            # written once at s == ns-1); (8, Epad) keeps the store dense.
            out_specs=pl.BlockSpec((None, 8, epad), lambda b, s: (b, 0, 0)),
            scratch_shapes=[pltpu.VMEM((8, cpad), jnp.float32),
                            pltpu.VMEM((ts, kpad), jnp.bfloat16)],
        ),
        compiler_params=pltpu.CompilerParams(
            # batch axis shards across TensorCores (v7x megacore); the spatial
            # axis is the pool reduction -> "arbitrary".
            dimension_semantics=("parallel", "arbitrary"),
        ),
    )(patches, conv_w, conv_b, fc_w, fc_b)
    return out[:, 0, :]                                          # [B, Epad]


# ----------------------------------------------------------------------------
# Glue (plain JAX): im2col patch extraction, padding, parameter construction
# ----------------------------------------------------------------------------
def _pad_to(x, axis, mult):
    pad = (-x.shape[axis]) % mult
    if pad == 0:
        return x
    widths = [(0, 0)] * x.ndim
    widths[axis] = (0, pad)
    return jnp.pad(x, widths)


def im2col(x_nchw, kh, kw, stride):
    """Returns patches [B, Ho*Wo, Cin*kh*kw] (K ordering matches PyTorch)."""
    B, C, H, W = x_nchw.shape
    Ho = (H - kh) // stride + 1
    Wo = (W - kw) // stride + 1
    cols = []
    for i in range(kh):
        for j in range(kw):
            cols.append(
                x_nchw[:, :, i:i + Ho * stride:stride, j:j + Wo * stride:stride]
            )  # each [B, C, Ho, Wo]
    p = jnp.stack(cols, axis=2)                      # [B, C, kh*kw, Ho, Wo]
    p = p.transpose(0, 3, 4, 1, 2)                   # [B, Ho, Wo, C, kh*kw]
    p = p.reshape(B, Ho * Wo, C * kh * kw)
    return p, Ho, Wo


def make_params(key, cin, cout, kh, kw, embedding_size):
    k_conv, k_bias, k_fc = jax.random.split(key, 3)
    K = cin * kh * kw
    # frozen backbone stand-in (synthetic deterministic weights, nonzero bias
    # so the padded-row-leak correction path is actually exercised)
    conv_w = 0.05 * jax.random.normal(k_conv, (cout, cin, kh, kw), jnp.float32)
    conv_w2d = conv_w.reshape(cout, K).T                       # [K, Cout]
    conv_b = 0.1 * jax.random.normal(k_bias, (1, cout), jnp.float32)
    # trainable FC head: xavier_normal_(weight), constant_(bias, 0.0)
    fan_in, fan_out = cout, embedding_size
    std = math.sqrt(2.0 / (fan_in + fan_out))
    fc_w = std * jax.random.normal(k_fc, (fan_in, fan_out), jnp.float32)
    fc_b = jnp.zeros((1, embedding_size), jnp.float32)
    raw = (conv_w2d, conv_b, fc_w, fc_b)

    # Resident operands only are lane-padded (zeros); conv matmul operands bf16.
    conv_w_p = _pad_to(_pad_to(conv_w2d, 0, LANE), 1, LANE).astype(jnp.bfloat16)
    conv_b_p = _pad_to(conv_b, 1, LANE)
    fc_w_p = _pad_to(_pad_to(fc_w, 0, LANE), 1, LANE)
    fc_b_p = _pad_to(fc_b, 1, LANE)
    padded = (conv_w_p, conv_b_p, fc_w_p, fc_b_p)
    return raw, padded


def encoder_cnn_forward(x_nchw, padded_params, *, embedding_size,
                        kh=3, kw=3, stride=2):
    conv_w, conv_b, fc_w, fc_b = padded_params
    patches, Ho, Wo = im2col(x_nchw, kh, kw, stride)           # [B, S, K] f32
    S = Ho * Wo
    # Streamed operand keeps its TRUE K (no lane padding in HBM); only the
    # spatial axis is padded up to a tile multiple (zeros).
    ts = min(TS_MAX, _round_up(S, 8))
    patches = _pad_to(patches, 1, ts).astype(jnp.bfloat16)     # [B, S_pad, K]
    out = _fused_conv_pool_fc(patches, conv_w, conv_b, fc_w, fc_b,
                              s_real=S, ts=ts)                 # [B, Epad]
    return out[:, :embedding_size]


# Pure-JAX reference (same bf16 conv-matmul precision) for sanity checking.
def encoder_cnn_ref(x_nchw, raw_params, *, kh=3, kw=3, stride=2):
    conv_w2d, conv_b, fc_w, fc_b = raw_params
    patches, Ho, Wo = im2col(x_nchw, kh, kw, stride)
    feats = jnp.dot(patches.astype(jnp.bfloat16),
                    conv_w2d.astype(jnp.bfloat16),
                    preferred_element_type=jnp.float32)
    feats = jnp.maximum(feats + conv_b, 0.0)
    pooled = feats.mean(axis=1)
    return pooled @ fc_w + fc_b


if __name__ == "__main__":
    key = jax.random.PRNGKey(0)
    k_x, k_p = jax.random.split(key)

    # Small stand-in for [batch, 3, 299, 299] inception input (64x64 so the
    # spatial/pool grid axis has >1 tile and the accumulator path is tested).
    B, C, H, W = 2, 3, 64, 64
    CONV_OUT = 16
    EMBED = 32

    x = jax.random.normal(k_x, (B, C, H, W), jnp.float32)      # NCHW
    raw_params, padded_params = make_params(k_p, C, CONV_OUT, 3, 3, EMBED)

    out = encoder_cnn_forward(x, padded_params, embedding_size=EMBED)
    out = jax.block_until_ready(out)

    ref = encoder_cnn_ref(x, raw_params)
    assert out.shape == (B, EMBED), out.shape
    assert jnp.allclose(out, ref, atol=2e-3, rtol=2e-3), "mismatch vs. reference"
    print("KERNEL_OK")
</pallas_src>

<mosaic_0001>
module attributes {stable_mosaic.version = 11 : i64} {
  func.func @fused_conv_pool_fc_kernel(%arg0: i32, %arg1: i32, %arg2: memref<1x512x27xbf16, #tpu.memory_space<vmem>>, %arg3: memref<128x128xbf16, #tpu.memory_space<vmem>>, %arg4: memref<1x128xf32, #tpu.memory_space<vmem>>, %arg5: memref<128x128xf32, #tpu.memory_space<vmem>>, %arg6: memref<1x128xf32, #tpu.memory_space<vmem>>, %arg7: memref<1x8x128xf32, #tpu.memory_space<vmem>>, %arg8: memref<8x128xf32, #tpu.memory_space<vmem>>, %arg9: memref<512x128xbf16, #tpu.memory_space<vmem>>) attributes {dimension_semantics = [#tpu.dimension_semantics<parallel>, #tpu.dimension_semantics<arbitrary>], iteration_bounds = array<i64: 2, 2>, scalar_prefetch = 0 : i64, scratch_operands = 2 : i64, tpu.core_type = #tpu.core_type<tc>, window_params = [{transform_indices = @transform_0, window_bounds = array<i64: 1, 512, 27>}, {pipeline_mode = #tpu.pipeline_mode<synchronous>, transform_indices = @transform_1, window_bounds = array<i64: 128, 128>}, {pipeline_mode = #tpu.pipeline_mode<synchronous>, transform_indices = @transform_2, window_bounds = array<i64: 1, 128>}, {pipeline_mode = #tpu.pipeline_mode<synchronous>, transform_indices = @transform_3, window_bounds = array<i64: 128, 128>}, {pipeline_mode = #tpu.pipeline_mode<synchronous>, transform_indices = @transform_4, window_bounds = array<i64: 1, 128>}, {transform_indices = @transform_5, window_bounds = array<i64: 1, 8, 128>}]} {
    %c0_i32 = arith.constant 0 : i32
    %0 = arith.cmpi eq, %arg1, %c0_i32 : i32
    %1 = arith.extui %0 : i1 to i32
    %c0_i32_0 = arith.constant 0 : i32
    %2 = arith.cmpi ne, %1, %c0_i32_0 : i32
    scf.if %2 {
      %cst_18 = arith.constant 0.000000e+00 : f32
      %22 = vector.broadcast %cst_18 : f32 to vector<8x128xf32>
      %c0_19 = arith.constant 0 : index
      %c0_20 = arith.constant 0 : index
      %23 = vector.load %arg8[%c0_19, %c0_20] : memref<8x128xf32, #tpu.memory_space<vmem>>, vector<8x128xf32>
      tpu.vector_store %arg8[%c0_19, %c0_20], %22 {strides = array<i32>} : memref<8x128xf32, #tpu.memory_space<vmem>>, vector<8x128xf32>,
      %cst_21 = arith.constant 0.000000e+00 : bf16
      %24 = vector.broadcast %cst_21 : bf16 to vector<512x128xbf16>
      %c0_22 = arith.constant 0 : index
      %c0_23 = arith.constant 0 : index
      %25 = vector.load %arg9[%c0_22, %c0_23] : memref<512x128xbf16, #tpu.memory_space<vmem>>, vector<512x128xbf16>
      tpu.vector_store %arg9[%c0_22, %c0_23], %24 {strides = array<i32>} : memref<512x128xbf16, #tpu.memory_space<vmem>>, vector<512x128xbf16>,
    } else {
    }
    %c0 = arith.constant 0 : index
    %c0_1 = arith.constant 0 : index
    %c0_2 = arith.constant 0 : index
    %3 = vector.load %arg2[%c0, %c0_1, %c0_2] : memref<1x512x27xbf16, #tpu.memory_space<vmem>>, vector<1x512x27xbf16>
    %4 = vector.shape_cast %3 : vector<1x512x27xbf16> to vector<512x27xbf16>
    %c0_3 = arith.constant 0 : index
    %c0_4 = arith.constant 0 : index
    %5 = vector.load %arg9[%c0_3, %c0_4] : memref<512x128xbf16, #tpu.memory_space<vmem>>, vector<512x27xbf16>
    tpu.vector_store %arg9[%c0_3, %c0_4], %4 {strides = array<i32>} : memref<512x128xbf16, #tpu.memory_space<vmem>>, vector<512x27xbf16>,
    %c0_5 = arith.constant 0 : index
    %c0_6 = arith.constant 0 : index
    %6 = vector.load %arg9[%c0_5, %c0_6] : memref<512x128xbf16, #tpu.memory_space<vmem>>, vector<512x128xbf16>
    %c0_7 = arith.constant 0 : index
    %c0_8 = arith.constant 0 : index
    %7 = vector.load %arg3[%c0_7, %c0_8] : memref<128x128xbf16, #tpu.memory_space<vmem>>, vector<128x128xbf16>
    %cst = arith.constant dense<0.000000e+00> : vector<512x128xf32>
    %8 = tpu.matmul %6, %7, %cst {dimension_numbers = #tpu.dot_dimension_numbers<[1], [0], [0], [1], [0, 0, 1, 1], [], []>} : vector<512x128xbf16>, vector<128x128xbf16>, vector<512x128xf32> -> vector<512x128xf32>
    %c0_9 = arith.constant 0 : index
    %c0_10 = arith.constant 0 : index
    %9 = vector.load %arg4[%c0_9, %c0_10] : memref<1x128xf32, #tpu.memory_space<vmem>>, vector<1x128xf32>
    %10 = vector.broadcast %9 : vector<1x128xf32> to vector<512x128xf32>
    %11 = arith.addf %8, %10 : vector<512x128xf32>
    %cst_11 = arith.constant 0.000000e+00 : f32
    %12 = vector.broadcast %cst_11 : f32 to vector<512x128xf32>
    %13 = arith.maximumf %11, %12 : vector<512x128xf32>
    %c0_12 = arith.constant 0 : index
    %c0_13 = arith.constant 0 : index
    %14 = vector.load %arg8[%c0_12, %c0_13] : memref<8x128xf32, #tpu.memory_space<vmem>>, vector<8x128xf32>
    %15 = vector.shape_cast %13 : vector<512x128xf32> to vector<64x8x128xf32>
    %cst_14 = arith.constant dense<0.000000e+00> : vector<8x128xf32>
    %16 = vector.multi_reduction <add>, %15, %cst_14 [0] : vector<64x8x128xf32> to vector<8x128xf32>
    %17 = arith.addf %14, %16 : vector<8x128xf32>
    %c0_15 = arith.constant 0 : index
    %c0_16 = arith.constant 0 : index
    %18 = vector.load %arg8[%c0_15, %c0_16] : memref<8x128xf32, #tpu.memory_space<vmem>>, vector<8x128xf32>
    tpu.vector_store %arg8[%c0_15, %c0_16], %17 {strides = array<i32>} : memref<8x128xf32, #tpu.memory_space<vmem>>, vector<8x128xf32>,
    %c1_i32 = arith.constant 1 : i32
    %19 = arith.cmpi eq, %arg1, %c1_i32 : i32
    %20 = arith.extui %19 : i1 to i32
    %c0_i32_17 = arith.constant 0 : i32
    %21 = arith.cmpi ne, %20, %c0_i32_17 : i32
    scf.if %21 {
      %c0_18 = arith.constant 0 : index
      %c0_19 = arith.constant 0 : index
      %22 = vector.load %arg8[%c0_18, %c0_19] : memref<8x128xf32, #tpu.memory_space<vmem>>, vector<8x128xf32>
      %cst_20 = arith.constant dense<0.000000e+00> : vector<128xf32>
      %23 = vector.multi_reduction <add>, %22, %cst_20 [0] : vector<8x128xf32> to vector<128xf32>
      %24 = vector.shape_cast %23 : vector<128xf32> to vector<1x128xf32>
      %c0_21 = arith.constant 0 : index
      %c0_22 = arith.constant 0 : index
      %25 = vector.load %arg4[%c0_21, %c0_22] : memref<1x128xf32, #tpu.memory_space<vmem>>, vector<1x128xf32>
      %cst_23 = arith.constant 0.000000e+00 : f32
      %26 = vector.broadcast %cst_23 : f32 to vector<1x128xf32>
      %27 = arith.maximumf %25, %26 : vector<1x128xf32>
      %cst_24 = arith.constant 6.300000e+01 : f32
      %28 = vector.broadcast %cst_24 : f32 to vector<1x128xf32>
      %29 = arith.mulf %28, %27 : vector<1x128xf32>
      %30 = arith.subf %24, %29 : vector<1x128xf32>
      %cst_25 = arith.constant 0.00104058278 : f32
      %31 = vector.broadcast %cst_25 : f32 to vector<1x128xf32>
      %32 = arith.mulf %30, %31 : vector<1x128xf32>
      %c0_26 = arith.constant 0 : index
      %c0_27 = arith.constant 0 : index
      %33 = vector.load %arg5[%c0_26, %c0_27] : memref<128x128xf32, #tpu.memory_space<vmem>>, vector<128x128xf32>
      %cst_28 = arith.constant dense<0.000000e+00> : vector<1x128xf32>
      %34 = tpu.matmul %32, %33, %cst_28 {dimension_numbers = #tpu.dot_dimension_numbers<[1], [0], [0], [1], [0, 0, 1, 1], [], []>} : vector<1x128xf32>, vector<128x128xf32>, vector<1x128xf32> -> vector<1x128xf32>
      %c0_29 = arith.constant 0 : index
      %c0_30 = arith.constant 0 : index
      %35 = vector.load %arg6[%c0_29, %c0_30] : memref<1x128xf32, #tpu.memory_space<vmem>>, vector<1x128xf32>
      %36 = arith.addf %34, %35 : vector<1x128xf32>
      %37 = vector.shape_cast %36 : vector<1x128xf32> to vector<1x128xf32>
      %38 = vector.broadcast %37 : vector<1x128xf32> to vector<8x128xf32>
      %c0_31 = arith.constant 0 : index
      %c0_32 = arith.constant 0 : index
      %c0_33 = arith.constant 0 : index
      %39 = vector.load %arg7[%c0_31, %c0_32, %c0_33] : memref<1x8x128xf32, #tpu.memory_space<vmem>>, vector<1x8x128xf32>
      %40 = vector.shape_cast %39 : vector<1x8x128xf32> to vector<8x128xf32>
      %41 = vector.shape_cast %38 : vector<8x128xf32> to vector<1x8x128xf32>
      tpu.vector_store %arg7[%c0_31, %c0_32, %c0_33], %41 {strides = array<i32>} : memref<1x8x128xf32, #tpu.memory_space<vmem>>, vector<1x8x128xf32>,
    } else {
    }
    return
  }
  func.func @transform_0(%arg0: i32, %arg1: i32) -> (i32, i32, i32) {
    %c0_i32 = arith.constant 0 : i32
    %c0_i32_0 = arith.constant 0 : i32
    return %arg0, %arg1, %c0_i32 : i32, i32, i32
  }
  func.func @transform_1(%arg0: i32, %arg1: i32) -> (i32, i32) {
    %c0_i32 = arith.constant 0 : i32
    %c0_i32_0 = arith.constant 0 : i32
    %c0_i32_1 = arith.constant 0 : i32
    return %c0_i32, %c0_i32_0 : i32, i32
  }
  func.func @transform_2(%arg0: i32, %arg1: i32) -> (i32, i32) {
    %c0_i32 = arith.constant 0 : i32
    %c0_i32_0 = arith.constant 0 : i32
    %c0_i32_1 = arith.constant 0 : i32
    return %c0_i32, %c0_i32_0 : i32, i32
  }
  func.func @transform_3(%arg0: i32, %arg1: i32) -> (i32, i32) {
    %c0_i32 = arith.constant 0 : i32
    %c0_i32_0 = arith.constant 0 : i32
    %c0_i32_1 = arith.constant 0 : i32
    return %c0_i32, %c0_i32_0 : i32, i32
  }
  func.func @transform_4(%arg0: i32, %arg1: i32) -> (i32, i32) {
    %c0_i32 = arith.constant 0 : i32
    %c0_i32_0 = arith.constant 0 : i32
    %c0_i32_1 = arith.constant 0 : i32
    return %c0_i32, %c0_i32_0 : i32, i32
  }
  func.func @transform_5(%arg0: i32, %arg1: i32) -> (i32, i32, i32) {
    %c0_i32 = arith.constant 0 : i32
    %c0_i32_0 = arith.constant 0 : i32
    %c0_i32_1 = arith.constant 0 : i32
    return %arg0, %c0_i32, %c0_i32_0 : i32, i32, i32
  }
}

</mosaic_0001>

<llo_original>
// kernel: tpu_custom_call.1
$region0: #{tpu_custom_call.1}
  #allocation0 [shape = 'u32[]', space=smem, size = 0x4, offset = 0x4, fixed_abs, tag = 'smem constant byte address 0x4 - core index']
  #allocation1 [shape = 'u32[144,128]{1,0:T(1,128)}', space=vmem, size = 0x12000, scoped, tag = 'internal scratch']
  #allocation2 [shape = 'f32[8,128]{1,0:T(8,128)}', space=vmem, size = 0x1000, scoped, tag = 'scratch operand']
  #allocation3 [shape = 'bf16[512,128]{1,0:T(16,128)(2,1)}', space=vmem, size = 0x20000, scoped, tag = 'scratch operand']
  %s0 = inlined_call_operand.vmem [shape: bf16[2,1024,27], index: 0, kind: input, shape index: {}]
  %s1 = inlined_call_operand.vmem [shape: bf16[128,128], index: 1, kind: input, shape index: {}]
  %s2 = inlined_call_operand.vmem [shape: f32[1,128], index: 2, kind: input, shape index: {}]
  %s3 = inlined_call_operand.vmem [shape: f32[128,128], index: 3, kind: input, shape index: {}]
  %s4 = inlined_call_operand.vmem [shape: f32[1,128], index: 4, kind: input, shape index: {}]
  %s5 = inlined_call_operand.hbm [shape: f32[2,8,128], index: 5, kind: output, shape index: {}]
  %s6 = sld [smem:[#allocation0]]
  $region61: #{tpu_custom_call.1} parent=0
    _
  %s8 = ssub.s32 1, %s6
  %s9 = scalar_select 0, %s8, %s6
  $region1: #{tpu_custom_call.1} parent=0
    #allocation4 [shape = 'u8[8192]{0}', space=vmem, size = 0x2000, scoped, tag = 'output window, operand 0']
    #allocation5 [shape = 's32[2]{0}', space=sflag, size = 0x8, scoped, tag = 'scoped memory for tpu_custom_call.1']
    %10 = vsyncpa [#allocation5], 0
    %s11 = scalar_lea.sflag [#allocation5], 1
    %12 = vsyncpa %s11, 0
    loop: start=0, step=1, limit=6
    $region2: #{tpu_custom_call.1} parent=1 // loop_pre_header
      _
    $region3: #{tpu_custom_call.1} parent=1 // loop_header
      %s14 = sphi 0, %s18
      %p15 = scmp.ge.s32.totalorder %s14, 6
      %s21 = sphi 0, %s33
      %s22 = sphi 0, %s29
      %s23 = sphi 0, %s21
      %s24 = sphi 0, %s22
      %s25 = sphi 0, %s23
      %s26 = sphi 0, %s24
      %s38 = sphi 0, %s40
      %s41 = sphi 0, %s38
      %s42 = sphi 0, %s41
      %s58 = sphi 0, %s42
      %s62 = sphi 0, %s62
      %s64 = sphi 0, %s62
      %s65 = sphi 0, %s64
      %s79 = sphi 0, %s65
      %s83 = sphi 0, %s83
      %s85 = sphi 0, %s83
      %s86 = sphi 0, %s85
      %s100 = sphi 0, %s86
      %s104 = sphi 0, %s104
      %s106 = sphi 0, %s104
      %s107 = sphi 0, %s106
      %s121 = sphi 0, %s107
      %s125 = sphi 0, %s125
      %s127 = sphi 0, %s125
      %s128 = sphi 0, %s127
      %s142 = sphi 0, %s128
      %s148 = sphi 0, %s150
      %s151 = sphi 0, %s148
      %s152 = sphi 0, %s151
      %s168 = sphi 0, %s152
    $region4: #{tpu_custom_call.1} parent=1 // loop_header_branch
      %17 = sbr.rel (%p15) target = $region8
    $region5: #{tpu_custom_call.1} parent=1 // loop_body
      %s19 = ssub.s32 %s14, 1
      %s20 = ssub.s32 %s14, 2
      %s27 = sadd.s32 1, %s22
      %p28 = scmp.ge.s32.totalorder %s27, 2
      %s29 = scalar_select %p28, 0, %s27
      %s30 = sadd.s32 1, %s21
      %s31 = scalar_select %p28, %s30, %s21
      %p32 = scmp.ge.s32.totalorder %s31, 2
      %s33 = scalar_select %p32, 0, %s31
      %s34 = ssub.s32 %s21, %s33
      %s35 = ssub.s32 %s22, %s29
      %s36 = sor.u32 %s34, %s35
      %p37 = scmp.eq.s32.totalorder %s36, 0
      %s39 = sadd.s32 %s38, 1
      %s40 = scalar_select %p37, %s38, %s39
      %p43 = pneg %p37
      %p44 = scmp.eq.s32.totalorder %s14, 3
      %p45 = por %p43, %p44
      %p46 = scmp.ne.s32.totalorder %s38, %s41
      %p47 = scmp.eq.s32.totalorder %s14, 0
      %p48 = por %p46, %p47
      %p49 = scmp.ne.s32.totalorder %s38, %s41
      %p50 = scmp.eq.s32.totalorder %s19, 3
      %p51 = por %p49, %p50
      %p52 = scmp.ne.s32.totalorder %s41, %s42
      %p53 = scmp.eq.s32.totalorder %s19, 0
      %p54 = por %p52, %p53
      %p55 = scmp.ne.s32.totalorder %s41, %s42
      %p56 = scmp.eq.s32.totalorder %s20, 3
      %p57 = por %p55, %p56
      %p59 = scmp.ne.s32.totalorder %s42, %s58
      %p60 = scmp.eq.s32.totalorder %s20, 0
      %p61 = por %p59, %p60
      %s63 = sadd.s32 %s62, 1
      %p66 = scmp.eq.s32.totalorder %s14, 3
      %p67 = scmp.ne.s32.totalorder %s62, %s64
      %p68 = scmp.eq.s32.totalorder %s14, 0
      %p69 = por %p67, %p68
      %p70 = scmp.ne.s32.totalorder %s62, %s64
      %p71 = scmp.eq.s32.totalorder %s19, 3
      %p72 = por %p70, %p71
      %p73 = scmp.ne.s32.totalorder %s64, %s65
      %p74 = scmp.eq.s32.totalorder %s19, 0
      %p75 = por %p73, %p74
      %p76 = scmp.ne.s32.totalorder %s64, %s65
      %p77 = scmp.eq.s32.totalorder %s20, 3
      %p78 = por %p76, %p77
      %p80 = scmp.ne.s32.totalorder %s65, %s79
      %p81 = scmp.eq.s32.totalorder %s20, 0
      %p82 = por %p80, %p81
      %s84 = sadd.s32 %s83, 1
      %p87 = scmp.eq.s32.totalorder %s14, 3
      %p88 = scmp.ne.s32.totalorder %s83, %s85
      %p89 = scmp.eq.s32.totalorder %s14, 0
      %p90 = por %p88, %p89
      %p91 = scmp.ne.s32.totalorder %s83, %s85
      %p92 = scmp.eq.s32.totalorder %s19, 3
      %p93 = por %p91, %p92
      %p94 = scmp.ne.s32.totalorder %s85, %s86
      %p95 = scmp.eq.s32.totalorder %s19, 0
      %p96 = por %p94, %p95
      %p97 = scmp.ne.s32.totalorder %s85, %s86
      %p98 = scmp.eq.s32.totalorder %s20, 3
      %p99 = por %p97, %p98
      %p101 = scmp.ne.s32.totalorder %s86, %s100
      %p102 = scmp.eq.s32.totalorder %s20, 0
      %p103 = por %p101, %p102
      %s105 = sadd.s32 %s104, 1
      %p108 = scmp.eq.s32.totalorder %s14, 3
      %p109 = scmp.ne.s32.totalorder %s104, %s106
      %p110 = scmp.eq.s32.totalorder %s14, 0
      %p111 = por %p109, %p110
      %p112 = scmp.ne.s32.totalorder %s104, %s106
      %p113 = scmp.eq.s32.totalorder %s19, 3
      %p114 = por %p112, %p113
      %p115 = scmp.ne.s32.totalorder %s106, %s107
      %p116 = scmp.eq.s32.totalorder %s19, 0
      %p117 = por %p115, %p116
      %p118 = scmp.ne.s32.totalorder %s106, %s107
      %p119 = scmp.eq.s32.totalorder %s20, 3
      %p120 = por %p118, %p119
      %p122 = scmp.ne.s32.totalorder %s107, %s121
      %p123 = scmp.eq.s32.totalorder %s20, 0
      %p124 = por %p122, %p123
      %s126 = sadd.s32 %s125, 1
      %p129 = scmp.eq.s32.totalorder %s14, 3
      %p130 = scmp.ne.s32.totalorder %s125, %s127
      %p131 = scmp.eq.s32.totalorder %s14, 0
      %p132 = por %p130, %p131
      %p133 = scmp.ne.s32.totalorder %s125, %s127
      %p134 = scmp.eq.s32.totalorder %s19, 3
      %p135 = por %p133, %p134
      %p136 = scmp.ne.s32.totalorder %s127, %s128
      %p137 = scmp.eq.s32.totalorder %s19, 0
      %p138 = por %p136, %p137
      %p139 = scmp.ne.s32.totalorder %s127, %s128
      %p140 = scmp.eq.s32.totalorder %s20, 3
      %p141 = por %p139, %p140
      %p143 = scmp.ne.s32.totalorder %s128, %s142
      %p144 = scmp.eq.s32.totalorder %s20, 0
      %p145 = por %p143, %p144
      %s146 = ssub.s32 %s21, %s33
      %p147 = scmp.eq.s32.totalorder %s146, 0
      %s149 = sadd.s32 %s148, 1
      %s150 = scalar_select %p147, %s148, %s149
      %p153 = pneg %p147
      %p154 = scmp.eq.s32.totalorder %s14, 3
      %p155 = por %p153, %p154
      %p156 = scmp.ne.s32.totalorder %s148, %s151
      %p157 = scmp.eq.s32.totalorder %s14, 0
      %p158 = por %p156, %p157
      %p159 = scmp.ne.s32.totalorder %s148, %s151
      %p160 = scmp.eq.s32.totalorder %s19, 3
      %p161 = por %p159, %p160
      %p162 = scmp.ne.s32.totalorder %s151, %s152
      %p163 = scmp.eq.s32.totalorder %s19, 0
      %p164 = por %p162, %p163
      %p165 = scmp.ne.s32.totalorder %s151, %s152
      %p166 = scmp.eq.s32.totalorder %s20, 3
      %p167 = por %p165, %p166
      %p169 = scmp.ne.s32.totalorder %s152, %s168
      %p170 = scmp.eq.s32.totalorder %s20, 0
      %p171 = por %p169, %p170
      %p172 = scmp.le.s32.totalorder 1, %s14
      %p173 = scmp.lt.s32.totalorder %s14, 5
      %p174 = pnand %p172, %p173
      %p175 = pneg %p174
      // Predicated region
      $region9: #{tpu_custom_call.1} parent=5 // pred_check
        _
      $region10: #{tpu_custom_call.1} parent=5 // pred_check_branch
        %177 = sbr.rel (%p174) target = $region12
      $region11: #{tpu_custom_call.1} parent=5 // pred_region
        %s178 = ssub.s32 %s14, 1
        // Predicated region
        $region13: #{tpu_custom_call.1} parent=11 // pred_check
          %p179 = pneg %p75
        $region14: #{tpu_custom_call.1} parent=11 // pred_check_branch
          %181 = sbr.rel (%p179) target = $region16
        $region15: #{tpu_custom_call.1} parent=11 // pred_region
          _
        $region16: #{tpu_custom_call.1} parent=11 // pred_fallthru
          _
        // Predicated region
        $region17: #{tpu_custom_call.1} parent=11 // pred_check
          %p182 = pneg %p96
        $region18: #{tpu_custom_call.1} parent=11 // pred_check_branch
          %184 = sbr.rel (%p182) target = $region20
        $region19: #{tpu_custom_call.1} parent=11 // pred_region
          _
        $region20: #{tpu_custom_call.1} parent=11 // pred_fallthru
          _
        // Predicated region
        $region21: #{tpu_custom_call.1} parent=11 // pred_check
          %p185 = pneg %p117
        $region22: #{tpu_custom_call.1} parent=11 // pred_check_branch
          %187 = sbr.rel (%p185) target = $region24
        $region23: #{tpu_custom_call.1} parent=11 // pred_region
          _
        $region24: #{tpu_custom_call.1} parent=11 // pred_fallthru
          _
        // Predicated region
        $region25: #{tpu_custom_call.1} parent=11 // pred_check
          %p188 = pneg %p138
        $region26: #{tpu_custom_call.1} parent=11 // pred_check_branch
          %190 = sbr.rel (%p188) target = $region28
        $region27: #{tpu_custom_call.1} parent=11 // pred_region
          _
        $region28: #{tpu_custom_call.1} parent=11 // pred_fallthru
          _
      $region12: #{tpu_custom_call.1} parent=5 // pred_fallthru
        _
      %p191 = scmp.lt.s32.totalorder %s14, 4
      // Predicated region
      $region29: #{tpu_custom_call.1} parent=5 // pred_check
        %p192 = pneg %p191
      $region30: #{tpu_custom_call.1} parent=5 // pred_check_branch
        %194 = sbr.rel (%p192) target = $region32
      $region31: #{tpu_custom_call.1} parent=5 // pred_region
        // Predicated region
        $region33: #{tpu_custom_call.1} parent=31 // pred_check
          %p195 = pneg %p48
        $region34: #{tpu_custom_call.1} parent=31 // pred_check_branch
          %197 = sbr.rel (%p195) target = $region36
        $region35: #{tpu_custom_call.1} parent=31 // pred_region
          %s198 = smul.u32 64, %s22
          %p199 = scmp.lt.s32.totalorder %s21, 1
          %s200 = scalar_select %p199, %s21, 1
          %p201 = scmp.lt.s32.totalorder %s198, 127
          %s202 = scalar_select %p201, %s198, 127
          %s203 = smul.addr %s200, 128
          %s204 = sadd.s32 %s202, %s203
          %s205 = smul.addr %s204, 4
          %s206 = scalar_lea.vmem %s0, %s205
          %s207 = smul.u32 64, %s22
        $region36: #{tpu_custom_call.1} parent=31 // pred_fallthru
          _
      $region32: #{tpu_custom_call.1} parent=5 // pred_fallthru
        _
      %p208 = scmp.le.s32.totalorder 1, %s14
      %p209 = scmp.lt.s32.totalorder %s14, 5
      %p210 = pnand %p208, %p209
      %p211 = pneg %p210
      // Predicated region
      $region37: #{tpu_custom_call.1} parent=5 // pred_check
        _
      $region38: #{tpu_custom_call.1} parent=5 // pred_check_branch
        %213 = sbr.rel (%p210) target = $region40
      $region39: #{tpu_custom_call.1} parent=5 // pred_region
        %s214 = ssub.s32 %s14, 1
        %s215 = smul.u32 64, %s24
        %p216 = scmp.lt.s32.totalorder %s23, 1
        %s217 = scalar_select %p216, %s23, 1
        %p218 = scmp.lt.s32.totalorder %s215, 127
        %s219 = scalar_select %p218, %s215, 127
        %s220 = smul.addr %s217, 128
        %s221 = sadd.s32 %s219, %s220
        %s222 = smul.addr %s221, 4
        %s223 = scalar_lea.vmem %s0, %s222
        %p224 = pneg %p54
        %p225 = pneg %p51
        %p226 = pneg %p75
        %p227 = pneg %p72
        %p228 = pneg %p96
        %p229 = pneg %p93
        %p230 = pneg %p117
        %p231 = pneg %p114
        %p232 = pneg %p138
        %p233 = pneg %p135
        %p234 = pneg %p164
        %p235 = pneg %p161
        %s236 = sand.u32 %s151, 1
        %s237 = scalar_lea.sflag [#allocation5], %s236
        %s238 = sand.u32 %s151, 1
        %s239 = smul.addr %s238, 8
        %s240 = scalar_lea.vmem [#allocation4], %s239
        %s241 = smul.u32 64, %s24
        %p242 = scmp.lt.s32.totalorder %s23, 1
        %s243 = scalar_select %p242, %s23, 1
        %p244 = scmp.lt.s32.totalorder %s241, 127
        %s245 = scalar_select %p244, %s241, 127
        %s246 = smul.addr %s243, 128
        %s247 = sadd.s32 %s245, %s246
        %s248 = smul.addr %s247, 4
        %s249 = scalar_lea.vmem %s0, %s248
        %s250 = smul.u32 64, %s24
        %p252 = scmp.eq.s32.totalorder %s24, 0
        // Predicated region
        $region41: #{tpu_custom_call.1} parent=39 // pred_check
          %p253 = pneg %p252
        $region42: #{tpu_custom_call.1} parent=39 // pred_check_branch
          %255 = sbr.rel (%p253) target = $region44
        $region43: #{tpu_custom_call.1} parent=39 // pred_region
          %256 = vst [vmem:[#allocation2] sm:$0xff] 0.0
          %257 = vst [vmem:[#allocation3] sm:$0xff] 0
          %258 = vst [vmem:[#allocation3 + $0x8] sm:$0xff] 0
          %259 = vst [vmem:[#allocation3 + $0x10] sm:$0xff] 0
          %260 = vst [vmem:[#allocation3 + $0x18] sm:$0xff] 0
          %261 = vst [vmem:[#allocation3 + $0x20] sm:$0xff] 0
          %262 = vst [vmem:[#allocation3 + $0x28] sm:$0xff] 0
          %263 = vst [vmem:[#allocation3 + $0x30] sm:$0xff] 0
          %264 = vst [vmem:[#allocation3 + $0x38] sm:$0xff] 0
          %265 = vst [vmem:[#allocation3 + $0x40] sm:$0xff] 0
          %266 = vst [vmem:[#allocation3 + $0x48] sm:$0xff] 0
          %267 = vst [vmem:[#allocation3 + $0x50] sm:$0xff] 0
          %268 = vst [vmem:[#allocation3 + $0x58] sm:$0xff] 0
          %269 = vst [vmem:[#allocation3 + $0x60] sm:$0xff] 0
          %270 = vst [vmem:[#allocation3 + $0x68] sm:$0xff] 0
          %271 = vst [vmem:[#allocation3 + $0x70] sm:$0xff] 0
          %272 = vst [vmem:[#allocation3 + $0x78] sm:$0xff] 0
          %273 = vst [vmem:[#allocation3 + $0x80] sm:$0xff] 0
          %274 = vst [vmem:[#allocation3 + $0x88] sm:$0xff] 0
          %275 = vst [vmem:[#allocation3 + $0x90] sm:$0xff] 0
          %276 = vst [vmem:[#allocation3 + $0x98] sm:$0xff] 0
          %277 = vst [vmem:[#allocation3 + $0xa0] sm:$0xff] 0
          %278 = vst [vmem:[#allocation3 + $0xa8] sm:$0xff] 0
          %279 = vst [vmem:[#allocation3 + $0xb0] sm:$0xff] 0
          %280 = vst [vmem:[#allocation3 + $0xb8] sm:$0xff] 0
          %281 = vst [vmem:[#allocation3 + $0xc0] sm:$0xff] 0
          %282 = vst [vmem:[#allocation3 + $0xc8] sm:$0xff] 0
          %283 = vst [vmem:[#allocation3 + $0xd0] sm:$0xff] 0
          %284 = vst [vmem:[#allocation3 + $0xd8] sm:$0xff] 0
          %285 = vst [vmem:[#allocation3 + $0xe0] sm:$0xff] 0
          %286 = vst [vmem:[#allocation3 + $0xe8] sm:$0xff] 0
          %287 = vst [vmem:[#allocation3 + $0xf0] sm:$0xff] 0
          %288 = vst [vmem:[#allocation3 + $0xf8] sm:$0xff] 0
        $region44: #{tpu_custom_call.1} parent=39 // pred_fallthru
          _
        %v289 = vld [vmem:[%s249] sm:$0xf]
        %v290 = vld [vmem:[%s249 + $0x4] sm:$0xf]
        %v291 = vld [vmem:[%s249 + $0x8] sm:$0xf]
        %v292 = vld [vmem:[%s249 + $0xc] sm:$0xf]
        %v293 = vld [vmem:[%s249 + $0x10] sm:$0xf]
        %v294 = vld [vmem:[%s249 + $0x14] sm:$0xf]
        %v295 = vld [vmem:[%s249 + $0x18] sm:$0xf]
        %v296 = vld [vmem:[%s249 + $0x1c] sm:$0xf]
        %v297 = vld [vmem:[%s249 + $0x20] sm:$0xf]
        %v298 = vld [vmem:[%s249 + $0x24] sm:$0xf]
        %v299 = vld [vmem:[%s249 + $0x28] sm:$0xf]
        %v300 = vld [vmem:[%s249 + $0x2c] sm:$0xf]
        %v301 = vld [vmem:[%s249 + $0x30] sm:$0xf]
        %v302 = vld [vmem:[%s249 + $0x34] sm:$0xf]
        %v303 = vld [vmem:[%s249 + $0x38] sm:$0xf]
        %v304 = vld [vmem:[%s249 + $0x3c] sm:$0xf]
        %v305 = vld [vmem:[%s249 + $0x40] sm:$0xf]
        %v306 = vld [vmem:[%s249 + $0x44] sm:$0xf]
        %v307 = vld [vmem:[%s249 + $0x48] sm:$0xf]
        %v308 = vld [vmem:[%s249 + $0x4c] sm:$0xf]
        %v309 = vld [vmem:[%s249 + $0x50] sm:$0xf]
        %v310 = vld [vmem:[%s249 + $0x54] sm:$0xf]
        %v311 = vld [vmem:[%s249 + $0x58] sm:$0xf]
        %v312 = vld [vmem:[%s249 + $0x5c] sm:$0xf]
        %v313 = vld [vmem:[%s249 + $0x60] sm:$0xf]
        %v314 = vld [vmem:[%s249 + $0x64] sm:$0xf]
        %v315 = vld [vmem:[%s249 + $0x68] sm:$0xf]
        %v316 = vld [vmem:[%s249 + $0x6c] sm:$0xf]
        %v317 = vld [vmem:[%s249 + $0x70] sm:$0xf]
        %v318 = vld [vmem:[%s249 + $0x74] sm:$0xf]
        %v319 = vld [vmem:[%s249 + $0x78] sm:$0xf]
        %v320 = vld [vmem:[%s249 + $0x7c] sm:$0xf]
        %v321 = vld [vmem:[%s249 + $0x80] sm:$0xf]
        %v322 = vld [vmem:[%s249 + $0x84] sm:$0xf]
        %v323 = vld [vmem:[%s249 + $0x88] sm:$0xf]
        %v324 = vld [vmem:[%s249 + $0x8c] sm:$0xf]
        %v325 = vld [vmem:[%s249 + $0x90] sm:$0xf]
        %v326 = vld [vmem:[%s249 + $0x94] sm:$0xf]
        %v327 = vld [vmem:[%s249 + $0x98] sm:$0xf]
        %v328 = vld [vmem:[%s249 + $0x9c] sm:$0xf]
        %v329 = vld [vmem:[%s249 + $0xa0] sm:$0xf]
        %v330 = vld [vmem:[%s249 + $0xa4] sm:$0xf]
        %v331 = vld [vmem:[%s249 + $0xa8] sm:$0xf]
        %v332 = vld [vmem:[%s249 + $0xac] sm:$0xf]
        %v333 = vld [vmem:[%s249 + $0xb0] sm:$0xf]
        %v334 = vld [vmem:[%s249 + $0xb4] sm:$0xf]
        %v335 = vld [vmem:[%s249 + $0xb8] sm:$0xf]
        %v336 = vld [vmem:[%s249 + $0xbc] sm:$0xf]
        %v337 = vld [vmem:[%s249 + $0xc0] sm:$0xf]
        %v338 = vld [vmem:[%s249 + $0xc4] sm:$0xf]
        %v339 = vld [vmem:[%s249 + $0xc8] sm:$0xf]
        %v340 = vld [vmem:[%s249 + $0xcc] sm:$0xf]
        %v341 = vld [vmem:[%s249 + $0xd0] sm:$0xf]
        %v342 = vld [vmem:[%s249 + $0xd4] sm:$0xf]
        %v343 = vld [vmem:[%s249 + $0xd8] sm:$0xf]
        %v344 = vld [vmem:[%s249 + $0xdc] sm:$0xf]
        %v345 = vld [vmem:[%s249 + $0xe0] sm:$0xf]
        %v346 = vld [vmem:[%s249 + $0xe4] sm:$0xf]
        %v347 = vld [vmem:[%s249 + $0xe8] sm:$0xf]
        %v348 = vld [vmem:[%s249 + $0xec] sm:$0xf]
        %v349 = vld [vmem:[%s249 + $0xf0] sm:$0xf]
        %v350 = vld [vmem:[%s249 + $0xf4] sm:$0xf]
        %v351 = vld [vmem:[%s249 + $0xf8] sm:$0xf]
        %v352 = vld [vmem:[%s249 + $0xfc] sm:$0xf]
        %v417 = vunpack.c.l.b16 %v289
        %v418 = vunpack.c.l.b16 %v290
        %v419 = vunpack.c.l.b16 %v291
        %v420 = vunpack.c.l.b16 %v292
        %v421 = vunpack.c.l.b16 %v293
        %v422 = vunpack.c.l.b16 %v294
        %v423 = vunpack.c.l.b16 %v295
        %v424 = vunpack.c.l.b16 %v296
        %v425 = vunpack.c.l.b16 %v297
        %v426 = vunpack.c.l.b16 %v298
        %v427 = vunpack.c.l.b16 %v299
        %v428 = vunpack.c.l.b16 %v300
        %v429 = vunpack.c.l.b16 %v301
        %v430 = vunpack.c.l.b16 %v302
        %v431 = vunpack.c.l.b16 %v303
        %v432 = vunpack.c.l.b16 %v304
        %v433 = vunpack.c.l.b16 %v305
        %v434 = vunpack.c.l.b16 %v306
        %v435 = vunpack.c.l.b16 %v307
        %v436 = vunpack.c.l.b16 %v308
        %v437 = vunpack.c.l.b16 %v309
        %v438 = vunpack.c.l.b16 %v310
        %v439 = vunpack.c.l.b16 %v311
        %v440 = vunpack.c.l.b16 %v312
        %v441 = vunpack.c.l.b16 %v313
        %v442 = vunpack.c.l.b16 %v314
        %v443 = vunpack.c.l.b16 %v315
        %v444 = vunpack.c.l.b16 %v316
        %v445 = vunpack.c.l.b16 %v317
        %v446 = vunpack.c.l.b16 %v318
        %v447 = vunpack.c.l.b16 %v319
        %v448 = vunpack.c.l.b16 %v320
        %v449 = vunpack.c.l.b16 %v321
        %v450 = vunpack.c.l.b16 %v322
        %v451 = vunpack.c.l.b16 %v323
        %v452 = vunpack.c.l.b16 %v324
        %v453 = vunpack.c.l.b16 %v325
        %v454 = vunpack.c.l.b16 %v326
        %v455 = vunpack.c.l.b16 %v327
        %v456 = vunpack.c.l.b16 %v328
        %v457 = vunpack.c.l.b16 %v329
        %v458 = vunpack.c.l.b16 %v330
        %v459 = vunpack.c.l.b16 %v331
        %v460 = vunpack.c.l.b16 %v332
        %v461 = vunpack.c.l.b16 %v333
        %v462 = vunpack.c.l.b16 %v334
        %v463 = vunpack.c.l.b16 %v335
        %v464 = vunpack.c.l.b16 %v336
        %v465 = vunpack.c.l.b16 %v337
        %v466 = vunpack.c.l.b16 %v338
        %v467 = vunpack.c.l.b16 %v339
        %v468 = vunpack.c.l.b16 %v340
        %v469 = vunpack.c.l.b16 %v341
        %v470 = vunpack.c.l.b16 %v342
        %v471 = vunpack.c.l.b16 %v343
        %v472 = vunpack.c.l.b16 %v344
        %v473 = vunpack.c.l.b16 %v345
        %v474 = vunpack.c.l.b16 %v346
        %v475 = vunpack.c.l.b16 %v347
        %v476 = vunpack.c.l.b16 %v348
        %v477 = vunpack.c.l.b16 %v349
        %v478 = vunpack.c.l.b16 %v350
        %v479 = vunpack.c.l.b16 %v351
        %v480 = vunpack.c.l.b16 %v352
        %v481 = vpack.c.b16 %v418, %v417
        %v482 = vpack.c.b16 %v420, %v419
        %v483 = vpack.c.b16 %v422, %v421
        %v484 = vpack.c.b16 %v424, %v423
        %v485 = vpack.c.b16 %v426, %v425
        %v486 = vpack.c.b16 %v428, %v427
        %v487 = vpack.c.b16 %v430, %v429
        %v488 = vpack.c.b16 %v432, %v431
        %v489 = vpack.c.b16 %v434, %v433
        %v490 = vpack.c.b16 %v436, %v435
        %v491 = vpack.c.b16 %v438, %v437
        %v492 = vpack.c.b16 %v440, %v439
        %v493 = vpack.c.b16 %v442, %v441
        %v494 = vpack.c.b16 %v444, %v443
        %v495 = vpack.c.b16 %v446, %v445
        %v496 = vpack.c.b16 %v448, %v447
        %v497 = vpack.c.b16 %v450, %v449
        %v498 = vpack.c.b16 %v452, %v451
        %v499 = vpack.c.b16 %v454, %v453
        %v500 = vpack.c.b16 %v456, %v455
        %v501 = vpack.c.b16 %v458, %v457
        %v502 = vpack.c.b16 %v460, %v459
        %v503 = vpack.c.b16 %v462, %v461
        %v504 = vpack.c.b16 %v464, %v463
        %v505 = vpack.c.b16 %v466, %v465
        %v506 = vpack.c.b16 %v468, %v467
        %v507 = vpack.c.b16 %v470, %v469
        %v508 = vpack.c.b16 %v472, %v471
        %v509 = vpack.c.b16 %v474, %v473
        %v510 = vpack.c.b16 %v476, %v475
        %v511 = vpack.c.b16 %v478, %v477
        %v512 = vpack.c.b16 %v480, %v479
        %vm545 = vcmask 220160
        %546 = vst.msk [vmem:[#allocation3] sm:$0xff] %vm545, %v481
        %547 = vst.msk [vmem:[#allocation3 + $0x8] sm:$0xff] %vm545, %v482
        %548 = vst.msk [vmem:[#allocation3 + $0x10] sm:$0xff] %vm545, %v483
        %549 = vst.msk [vmem:[#allocation3 + $0x18] sm:$0xff] %vm545, %v484
        %550 = vst.msk [vmem:[#allocation3 + $0x20] sm:$0xff] %vm545, %v485
        %551 = vst.msk [vmem:[#allocation3 + $0x28] sm:$0xff] %vm545, %v486
        %552 = vst.msk [vmem:[#allocation3 + $0x30] sm:$0xff] %vm545, %v487
        %553 = vst.msk [vmem:[#allocation3 + $0x38] sm:$0xff] %vm545, %v488
        %554 = vst.msk [vmem:[#allocation3 + $0x40] sm:$0xff] %vm545, %v489
        %555 = vst.msk [vmem:[#allocation3 + $0x48] sm:$0xff] %vm545, %v490
        %556 = vst.msk [vmem:[#allocation3 + $0x50] sm:$0xff] %vm545, %v491
        %557 = vst.msk [vmem:[#allocation3 + $0x58] sm:$0xff] %vm545, %v492
        %558 = vst.msk [vmem:[#allocation3 + $0x60] sm:$0xff] %vm545, %v493
        %559 = vst.msk [vmem:[#allocation3 + $0x68] sm:$0xff] %vm545, %v494
        %560 = vst.msk [vmem:[#allocation3 + $0x70] sm:$0xff] %vm545, %v495
        %561 = vst.msk [vmem:[#allocation3 + $0x78] sm:$0xff] %vm545, %v496
        %562 = vst.msk [vmem:[#allocation3 + $0x80] sm:$0xff] %vm545, %v497
        %563 = vst.msk [vmem:[#allocation3 + $0x88] sm:$0xff] %vm545, %v498
        %564 = vst.msk [vmem:[#allocation3 + $0x90] sm:$0xff] %vm545, %v499
        %565 = vst.msk [vmem:[#allocation3 + $0x98] sm:$0xff] %vm545, %v500
        %566 = vst.msk [vmem:[#allocation3 + $0xa0] sm:$0xff] %vm545, %v501
        %567 = vst.msk [vmem:[#allocation3 + $0xa8] sm:$0xff] %vm545, %v502
        %568 = vst.msk [vmem:[#allocation3 + $0xb0] sm:$0xff] %vm545, %v503
        %569 = vst.msk [vmem:[#allocation3 + $0xb8] sm:$0xff] %vm545, %v504
        %570 = vst.msk [vmem:[#allocation3 + $0xc0] sm:$0xff] %vm545, %v505
        %571 = vst.msk [vmem:[#allocation3 + $0xc8] sm:$0xff] %vm545, %v506
        %572 = vst.msk [vmem:[#allocation3 + $0xd0] sm:$0xff] %vm545, %v507
        %573 = vst.msk [vmem:[#allocation3 + $0xd8] sm:$0xff] %vm545, %v508
        %574 = vst.msk [vmem:[#allocation3 + $0xe0] sm:$0xff] %vm545, %v509
        %575 = vst.msk [vmem:[#allocation3 + $0xe8] sm:$0xff] %vm545, %v510
        %576 = vst.msk [vmem:[#allocation3 + $0xf0] sm:$0xff] %vm545, %v511
        %577 = vst.msk [vmem:[#allocation3 + $0xf8] sm:$0xff] %vm545, %v512
        %v578 = vld [vmem:[#allocation3] sm:$0xff]
        %v579 = vld [vmem:[#allocation3 + $0x8] sm:$0xff]
        %v580 = vld [vmem:[#allocation3 + $0x10] sm:$0xff]
        %v581 = vld [vmem:[#allocation3 + $0x18] sm:$0xff]
        %v582 = vld [vmem:[#allocation3 + $0x20] sm:$0xff]
        %v583 = vld [vmem:[#allocation3 + $0x28] sm:$0xff]
        %v584 = vld [vmem:[#allocation3 + $0x30] sm:$0xff]
        %v585 = vld [vmem:[#allocation3 + $0x38] sm:$0xff]
        %v586 = vld [vmem:[#allocation3 + $0x40] sm:$0xff]
        %v587 = vld [vmem:[#allocation3 + $0x48] sm:$0xff]
        %v588 = vld [vmem:[#allocation3 + $0x50] sm:$0xff]
        %v589 = vld [vmem:[#allocation3 + $0x58] sm:$0xff]
        %v590 = vld [vmem:[#allocation3 + $0x60] sm:$0xff]
        %v591 = vld [vmem:[#allocation3 + $0x68] sm:$0xff]
        %v592 = vld [vmem:[#allocation3 + $0x70] sm:$0xff]
        %v593 = vld [vmem:[#allocation3 + $0x78] sm:$0xff]
        %v594 = vld [vmem:[#allocation3 + $0x80] sm:$0xff]
        %v595 = vld [vmem:[#allocation3 + $0x88] sm:$0xff]
        %v596 = vld [vmem:[#allocation3 + $0x90] sm:$0xff]
        %v597 = vld [vmem:[#allocation3 + $0x98] sm:$0xff]
        %v598 = vld [vmem:[#allocation3 + $0xa0] sm:$0xff]
        %v599 = vld [vmem:[#allocation3 + $0xa8] sm:$0xff]
        %v600 = vld [vmem:[#allocation3 + $0xb0] sm:$0xff]
        %v601 = vld [vmem:[#allocation3 + $0xb8] sm:$0xff]
        %v602 = vld [vmem:[#allocation3 + $0xc0] sm:$0xff]
        %v603 = vld [vmem:[#allocation3 + $0xc8] sm:$0xff]
        %v604 = vld [vmem:[#allocation3 + $0xd0] sm:$0xff]
        %v605 = vld [vmem:[#allocation3 + $0xd8] sm:$0xff]
        %v606 = vld [vmem:[#allocation3 + $0xe0] sm:$0xff]
        %v607 = vld [vmem:[#allocation3 + $0xe8] sm:$0xff]
        %v608 = vld [vmem:[#allocation3 + $0xf0] sm:$0xff]
        %v609 = vld [vmem:[#allocation3 + $0xf8] sm:$0xff]
        %v610 = vld [vmem:[%s1] sm:$0xf]
        %v611 = vld [vmem:[%s1 + $0x4] sm:$0xf]
        %v612 = vld [vmem:[%s1 + $0x8] sm:$0xf]
        %v613 = vld [vmem:[%s1 + $0xc] sm:$0xf]
        %v614 = vld [vmem:[%s1 + $0x10] sm:$0xf]
        %v615 = vld [vmem:[%s1 + $0x14] sm:$0xf]
        %v616 = vld [vmem:[%s1 + $0x18] sm:$0xf]
        %v617 = vld [vmem:[%s1 + $0x1c] sm:$0xf]
        %v618 = vld [vmem:[%s1 + $0x20] sm:$0xf]
        %v619 = vld [vmem:[%s1 + $0x24] sm:$0xf]
        %v620 = vld [vmem:[%s1 + $0x28] sm:$0xf]
        %v621 = vld [vmem:[%s1 + $0x2c] sm:$0xf]
        %v622 = vld [vmem:[%s1 + $0x30] sm:$0xf]
        %v623 = vld [vmem:[%s1 + $0x34] sm:$0xf]
        %v624 = vld [vmem:[%s1 + $0x38] sm:$0xf]
        %v625 = vld [vmem:[%s1 + $0x3c] sm:$0xf]
        %v626 = vld [vmem:[%s2] sm:$0x1]
        %v628 = vlaneseq
        %v629 = vshrl.u32 %v628, 7
        %v630 = vsub.s32 0, %v629
        %v631 = vrot.slane %v626, %v630
        %v649 = vunpack.c.l.b16 %v610
        %v650 = vunpack.c.l.b16 %v611
        %v651 = vunpack.c.l.b16 %v612
        %v652 = vunpack.c.l.b16 %v613
        %v653 = vunpack.c.l.b16 %v614
        %v654 = vunpack.c.l.b16 %v615
        %v655 = vunpack.c.l.b16 %v616
        %v656 = vunpack.c.l.b16 %v617
        %v657 = vunpack.c.l.b16 %v618
        %v658 = vunpack.c.l.b16 %v619
        %v659 = vunpack.c.l.b16 %v620
        %v660 = vunpack.c.l.b16 %v621
        %v661 = vunpack.c.l.b16 %v622
        %v662 = vunpack.c.l.b16 %v623
        %v663 = vunpack.c.l.b16 %v624
        %v664 = vunpack.c.l.b16 %v625
        %v665 = vpack.c.b16 %v650, %v649
        %v666 = vpack.c.b16 %v652, %v651
        %v667 = vpack.c.b16 %v654, %v653
        %v668 = vpack.c.b16 %v656, %v655
        %v669 = vpack.c.b16 %v658, %v657
        %v670 = vpack.c.b16 %v660, %v659
        %v671 = vpack.c.b16 %v662, %v661
        %v672 = vpack.c.b16 %v664, %v663
        %681 = vmatprep.subr.bf16.mxu0 0
        %682 = vmatpush1.bf16.msra.mxu0 %v665
        %683 = vmatprep.subr.bf16.mxu0 0
        %684 = vmatpush1.bf16.msra.mxu0 %v666
        %685 = vmatprep.subr.bf16.mxu0 0
        %686 = vmatpush1.bf16.msra.mxu0 %v667
        %687 = vmatprep.subr.bf16.mxu0 0
        %688 = vmatpush1.bf16.msra.mxu0 %v668
        %689 = vmatprep.subr.bf16.mxu0 0
        %690 = vmatpush1.bf16.msra.mxu0 %v669
        %691 = vmatprep.subr.bf16.mxu0 0
        %692 = vmatpush1.bf16.msra.mxu0 %v670
        %693 = vmatprep.subr.bf16.mxu0 0
        %694 = vmatpush1.bf16.msra.mxu0 %v671
        %695 = vmatprep.subr.bf16.mxu0 0
        %696 = vmatpush1.bf16.msra.mxu0 %v672
        %697 = vmatprep.subr.bf16.mxu0 0
        %698 = vmatpush1.bf16.msra.mxu0 0
        %699 = vmatprep.subr.bf16.mxu0 0
        %700 = vmatpush1.bf16.msra.mxu0 0
        %701 = vmatprep.subr.bf16.mxu0 0
        %702 = vmatpush1.bf16.msra.mxu0 0
        %703 = vmatprep.subr.bf16.mxu0 0
        %704 = vmatpush1.bf16.msra.mxu0 0
        %705 = vmatprep.subr.bf16.mxu0 0
        %706 = vmatpush1.bf16.msra.mxu0 0
        %707 = vmatprep.subr.bf16.mxu0 0
        %708 = vmatpush1.bf16.msra.mxu0 0
        %709 = vmatprep.subr.bf16.mxu0 0
        %710 = vmatpush1.bf16.msra.mxu0 0
        %711 = vmatprep.subr.bf16.mxu0 0
        %712 = vmatpush1.bf16.msra.mxu0 0
        %713 = vmatprep.mubr.bf16.mxu0 0
        %714 = vmatmul.mubr.bf16.gmra.mrb[0].mxu0 %v578
        %v715 = vpop.f32.mrb[0].mxu0
        %v716 = vadd.f32 %v631, %v715
        %v717 = vpop.f32.mrb[0].mxu0
        %v718 = vpop.f32.mrb[0].mxu0
        %v719 = vadd.f32 %v631, %v718
        %v720 = vpop.f32.mrb[0].mxu0
        %721 = vmatprep.mubr.bf16.mxu0 0
        %722 = vmatmul.mubr.bf16.gmra.mrb[0].mxu0 %v579
        %v723 = vpop.f32.mrb[0].mxu0
        %v724 = vadd.f32 %v631, %v723
        %v725 = vpop.f32.mrb[0].mxu0
        %v726 = vpop.f32.mrb[0].mxu0
        %v727 = vadd.f32 %v631, %v726
        %v728 = vpop.f32.mrb[0].mxu0
        %729 = vmatprep.mubr.bf16.mxu0 0
        %730 = vmatmul.mubr.bf16.gmra.mrb[0].mxu0 %v580
        %v731 = vpop.f32.mrb[0].mxu0
        %v732 = vadd.f32 %v631, %v731
        %v733 = vpop.f32.mrb[0].mxu0
        %v734 = vpop.f32.mrb[0].mxu0
        %v735 = vadd.f32 %v631, %v734
        %v736 = vpop.f32.mrb[0].mxu0
        %737 = vmatprep.mubr.bf16.mxu0 0
        %738 = vmatmul.mubr.bf16.gmra.mrb[0].mxu0 %v581
        %v739 = vpop.f32.mrb[0].mxu0
        %v740 = vadd.f32 %v631, %v739
        %v741 = vpop.f32.mrb[0].mxu0
        %v742 = vpop.f32.mrb[0].mxu0
        %v743 = vadd.f32 %v631, %v742
        %v744 = vpop.f32.mrb[0].mxu0
        %745 = vmatprep.mubr.bf16.mxu0 0
        %746 = vmatmul.mubr.bf16.gmra.mrb[0].mxu0 %v582
        %v747 = vpop.f32.mrb[0].mxu0
        %v748 = vadd.f32 %v631, %v747
        %v749 = vpop.f32.mrb[0].mxu0
        %v750 = vpop.f32.mrb[0].mxu0
        %v751 = vadd.f32 %v631, %v750
        %v752 = vpop.f32.mrb[0].mxu0
        %753 = vmatprep.mubr.bf16.mxu0 0
        %754 = vmatmul.mubr.bf16.gmra.mrb[0].mxu0 %v583
        %v755 = vpop.f32.mrb[0].mxu0
        %v756 = vadd.f32 %v631, %v755
        %v757 = vpop.f32.mrb[0].mxu0
        %v758 = vpop.f32.mrb[0].mxu0
        %v759 = vadd.f32 %v631, %v758
        %v760 = vpop.f32.mrb[0].mxu0
        %761 = vmatprep.mubr.bf16.mxu0 0
        %762 = vmatmul.mubr.bf16.gmra.mrb[0].mxu0 %v584
        %v763 = vpop.f32.mrb[0].mxu0
        %v764 = vadd.f32 %v631, %v763
        %v765 = vpop.f32.mrb[0].mxu0
        %v766 = vpop.f32.mrb[0].mxu0
        %v767 = vadd.f32 %v631, %v766
        %v768 = vpop.f32.mrb[0].mxu0
        %769 = vmatprep.mubr.bf16.mxu0 0
        %770 = vmatmul.mubr.bf16.gmra.mrb[0].mxu0 %v585
        %v771 = vpop.f32.mrb[0].mxu0
        %v772 = vadd.f32 %v631, %v771
        %v773 = vpop.f32.mrb[0].mxu0
        %v774 = vpop.f32.mrb[0].mxu0
        %v775 = vadd.f32 %v631, %v774
        %v776 = vpop.f32.mrb[0].mxu0
        %777 = vmatprep.mubr.bf16.mxu0 0
        %778 = vmatmul.mubr.bf16.gmra.mrb[0].mxu0 %v586
        %v779 = vpop.f32.mrb[0].mxu0
        %v780 = vadd.f32 %v631, %v779
        %v781 = vpop.f32.mrb[0].mxu0
        %v782 = vpop.f32.mrb[0].mxu0
        %v783 = vadd.f32 %v631, %v782
        %v784 = vpop.f32.mrb[0].mxu0
        %785 = vmatprep.mubr.bf16.mxu0 0
        %786 = vmatmul.mubr.bf16.gmra.mrb[0].mxu0 %v587
        %v787 = vpop.f32.mrb[0].mxu0
        %v788 = vadd.f32 %v631, %v787
        %v789 = vpop.f32.mrb[0].mxu0
        %v790 = vpop.f32.mrb[0].mxu0
        %v791 = vadd.f32 %v631, %v790
        %v792 = vpop.f32.mrb[0].mxu0
        %793 = vmatprep.mubr.bf16.mxu0 0
        %794 = vmatmul.mubr.bf16.gmra.mrb[0].mxu0 %v588
        %v795 = vpop.f32.mrb[0].mxu0
        %v796 = vadd.f32 %v631, %v795
        %v797 = vpop.f32.mrb[0].mxu0
        %v798 = vpop.f32.mrb[0].mxu0
        %v799 = vadd.f32 %v631, %v798
        %v800 = vpop.f32.mrb[0].mxu0
        %801 = vmatprep.mubr.bf16.mxu0 0
        %802 = vmatmul.mubr.bf16.gmra.mrb[0].mxu0 %v589
        %v803 = vpop.f32.mrb[0].mxu0
        %v804 = vadd.f32 %v631, %v803
        %v805 = vpop.f32.mrb[0].mxu0
        %v806 = vpop.f32.mrb[0].mxu0
        %v807 = vadd.f32 %v631, %v806
        %v808 = vpop.f32.mrb[0].mxu0
        %809 = vmatprep.mubr.bf16.mxu0 0
        %810 = vmatmul.mubr.bf16.gmra.mrb[0].mxu0 %v590
        %v811 = vpop.f32.mrb[0].mxu0
        %v812 = vadd.f32 %v631, %v811
        %v813 = vpop.f32.mrb[0].mxu0
        %v814 = vpop.f32.mrb[0].mxu0
        %v815 = vadd.f32 %v631, %v814
        %v816 = vpop.f32.mrb[0].mxu0
        %817 = vmatprep.mubr.bf16.mxu0 0
        %818 = vmatmul.mubr.bf16.gmra.mrb[0].mxu0 %v591
        %v819 = vpop.f32.mrb[0].mxu0
        %v820 = vadd.f32 %v631, %v819
        %v821 = vpop.f32.mrb[0].mxu0
        %v822 = vpop.f32.mrb[0].mxu0
        %v823 = vadd.f32 %v631, %v822
        %v824 = vpop.f32.mrb[0].mxu0
        %825 = vmatprep.mubr.bf16.mxu0 0
        %826 = vmatmul.mubr.bf16.gmra.mrb[0].mxu0 %v592
        %v827 = vpop.f32.mrb[0].mxu0
        %v828 = vadd.f32 %v631, %v827
        %v829 = vpop.f32.mrb[0].mxu0
        %v830 = vpop.f32.mrb[0].mxu0
        %v831 = vadd.f32 %v631, %v830
        %v832 = vpop.f32.mrb[0].mxu0
        %833 = vmatprep.mubr.bf16.mxu0 0
        %834 = vmatmul.mubr.bf16.gmra.mrb[0].mxu0 %v593
        %v835 = vpop.f32.mrb[0].mxu0
        %v836 = vadd.f32 %v631, %v835
        %v837 = vpop.f32.mrb[0].mxu0
        %v838 = vpop.f32.mrb[0].mxu0
        %v839 = vadd.f32 %v631, %v838
        %v840 = vpop.f32.mrb[0].mxu0
        %841 = vmatprep.mubr.bf16.mxu0 0
        %842 = vmatmul.mubr.bf16.gmra.mrb[0].mxu0 %v594
        %v843 = vpop.f32.mrb[0].mxu0
        %v844 = vadd.f32 %v631, %v843
        %v845 = vpop.f32.mrb[0].mxu0
        %v846 = vpop.f32.mrb[0].mxu0
        %v847 = vadd.f32 %v631, %v846
        %v848 = vpop.f32.mrb[0].mxu0
        %849 = vmatprep.mubr.bf16.mxu0 0
        %850 = vmatmul.mubr.bf16.gmra.mrb[0].mxu0 %v595
        %v851 = vpop.f32.mrb[0].mxu0
        %v852 = vadd.f32 %v631, %v851
        %v853 = vpop.f32.mrb[0].mxu0
        %v854 = vpop.f32.mrb[0].mxu0
        %v855 = vadd.f32 %v631, %v854
        %v856 = vpop.f32.mrb[0].mxu0
        %857 = vmatprep.mubr.bf16.mxu0 0
        %858 = vmatmul.mubr.bf16.gmra.mrb[0].mxu0 %v596
        %v859 = vpop.f32.mrb[0].mxu0
        %v860 = vadd.f32 %v631, %v859
        %v861 = vpop.f32.mrb[0].mxu0
        %v862 = vpop.f32.mrb[0].mxu0
        %v863 = vadd.f32 %v631, %v862
        %v864 = vpop.f32.mrb[0].mxu0
        %865 = vmatprep.mubr.bf16.mxu0 0
        %866 = vmatmul.mubr.bf16.gmra.mrb[0].mxu0 %v597
        %v867 = vpop.f32.mrb[0].mxu0
        %v868 = vadd.f32 %v631, %v867
        %v869 = vpop.f32.mrb[0].mxu0
        %v870 = vpop.f32.mrb[0].mxu0
        %v871 = vadd.f32 %v631, %v870
        %v872 = vpop.f32.mrb[0].mxu0
        %873 = vmatprep.mubr.bf16.mxu0 0
        %874 = vmatmul.mubr.bf16.gmra.mrb[0].mxu0 %v598
        %v875 = vpop.f32.mrb[0].mxu0
        %v876 = vadd.f32 %v631, %v875
        %v877 = vpop.f32.mrb[0].mxu0
        %v878 = vpop.f32.mrb[0].mxu0
        %v879 = vadd.f32 %v631, %v878
        %v880 = vpop.f32.mrb[0].mxu0
        %881 = vmatprep.mubr.bf16.mxu0 0
        %882 = vmatmul.mubr.bf16.gmra.mrb[0].mxu0 %v599
        %v883 = vpop.f32.mrb[0].mxu0
        %v884 = vadd.f32 %v631, %v883
        %v885 = vpop.f32.mrb[0].mxu0
        %v886 = vpop.f32.mrb[0].mxu0
        %v887 = vadd.f32 %v631, %v886
        %v888 = vpop.f32.mrb[0].mxu0
        %889 = vmatprep.mubr.bf16.mxu0 0
        %890 = vmatmul.mubr.bf16.gmra.mrb[0].mxu0 %v600
        %v891 = vpop.f32.mrb[0].mxu0
        %v892 = vadd.f32 %v631, %v891
        %v893 = vpop.f32.mrb[0].mxu0
        %v894 = vpop.f32.mrb[0].mxu0
        %v895 = vadd.f32 %v631, %v894
        %v896 = vpop.f32.mrb[0].mxu0
        %897 = vmatprep.mubr.bf16.mxu0 0
        %898 = vmatmul.mubr.bf16.gmra.mrb[0].mxu0 %v601
        %v899 = vpop.f32.mrb[0].mxu0
        %v900 = vadd.f32 %v631, %v899
        %v901 = vpop.f32.mrb[0].mxu0
        %v902 = vpop.f32.mrb[0].mxu0
        %v903 = vadd.f32 %v631, %v902
        %v904 = vpop.f32.mrb[0].mxu0
        %905 = vmatprep.mubr.bf16.mxu0 0
        %906 = vmatmul.mubr.bf16.gmra.mrb[0].mxu0 %v602
        %v907 = vpop.f32.mrb[0].mxu0
        %v908 = vadd.f32 %v631, %v907
        %v909 = vpop.f32.mrb[0].mxu0
        %v910 = vpop.f32.mrb[0].mxu0
        %v911 = vadd.f32 %v631, %v910
        %v912 = vpop.f32.mrb[0].mxu0
        %913 = vmatprep.mubr.bf16.mxu0 0
        %914 = vmatmul.mubr.bf16.gmra.mrb[0].mxu0 %v603
        %v915 = vpop.f32.mrb[0].mxu0
        %v916 = vadd.f32 %v631, %v915
        %v917 = vpop.f32.mrb[0].mxu0
        %v918 = vpop.f32.mrb[0].mxu0
        %v919 = vadd.f32 %v631, %v918
        %v920 = vpop.f32.mrb[0].mxu0
        %921 = vmatprep.mubr.bf16.mxu0 0
        %922 = vmatmul.mubr.bf16.gmra.mrb[0].mxu0 %v604
        %v923 = vpop.f32.mrb[0].mxu0
        %v924 = vadd.f32 %v631, %v923
        %v925 = vpop.f32.mrb[0].mxu0
        %v926 = vpop.f32.mrb[0].mxu0
        %v927 = vadd.f32 %v631, %v926
        %v928 = vpop.f32.mrb[0].mxu0
        %929 = vmatprep.mubr.bf16.mxu0 0
        %930 = vmatmul.mubr.bf16.gmra.mrb[0].mxu0 %v605
        %v931 = vpop.f32.mrb[0].mxu0
        %v932 = vadd.f32 %v631, %v931
        %v933 = vpop.f32.mrb[0].mxu0
        %v934 = vpop.f32.mrb[0].mxu0
        %v935 = vadd.f32 %v631, %v934
        %v936 = vpop.f32.mrb[0].mxu0
        %937 = vmatprep.mubr.bf16.mxu0 0
        %938 = vmatmul.mubr.bf16.gmra.mrb[0].mxu0 %v606
        %v939 = vpop.f32.mrb[0].mxu0
        %v940 = vadd.f32 %v631, %v939
        %v941 = vpop.f32.mrb[0].mxu0
        %v942 = vpop.f32.mrb[0].mxu0
        %v943 = vadd.f32 %v631, %v942
        %v944 = vpop.f32.mrb[0].mxu0
        %945 = vmatprep.mubr.bf16.mxu0 0
        %946 = vmatmul.mubr.bf16.gmra.mrb[0].mxu0 %v607
        %v947 = vpop.f32.mrb[0].mxu0
        %v948 = vadd.f32 %v631, %v947
        %v949 = vpop.f32.mrb[0].mxu0
        %v950 = vpop.f32.mrb[0].mxu0
        %v951 = vadd.f32 %v631, %v950
        %v952 = vpop.f32.mrb[0].mxu0
        %953 = vmatprep.mubr.bf16.mxu0 0
        %954 = vmatmul.mubr.bf16.gmra.mrb[0].mxu0 %v608
        %v955 = vpop.f32.mrb[0].mxu0
        %v956 = vadd.f32 %v631, %v955
        %v957 = vpop.f32.mrb[0].mxu0
        %v958 = vpop.f32.mrb[0].mxu0
        %v959 = vadd.f32 %v631, %v958
        %v960 = vpop.f32.mrb[0].mxu0
        %961 = vmatprep.mubr.bf16.mxu0 0
        %962 = vmatmul.mubr.bf16.gmra.mrb[0].mxu0 %v609
        %v963 = vpop.f32.mrb[0].mxu0
        %v964 = vadd.f32 %v631, %v963
        %v965 = vpop.f32.mrb[0].mxu0
        %v966 = vpop.f32.mrb[0].mxu0
        %v967 = vadd.f32 %v631, %v966
        %v968 = vpop.f32.mrb[0].mxu0
        %969 = vdwg.mxu0
        %v970 = vmax.f32 %v716, 0.0
        %v971 = vmax.f32 %v719, 0.0
        %v972 = vmax.f32 %v724, 0.0
        %v973 = vmax.f32 %v727, 0.0
        %v974 = vmax.f32 %v732, 0.0
        %v975 = vmax.f32 %v735, 0.0
        %v976 = vmax.f32 %v740, 0.0
        %v977 = vmax.f32 %v743, 0.0
        %v978 = vmax.f32 %v748, 0.0
        %v979 = vmax.f32 %v751, 0.0
        %v980 = vmax.f32 %v756, 0.0
        %v981 = vmax.f32 %v759, 0.0
        %v982 = vmax.f32 %v764, 0.0
        %v983 = vmax.f32 %v767, 0.0
        %v984 = vmax.f32 %v772, 0.0
        %v985 = vmax.f32 %v775, 0.0
        %v986 = vmax.f32 %v780, 0.0
        %v987 = vmax.f32 %v783, 0.0
        %v988 = vmax.f32 %v788, 0.0
        %v989 = vmax.f32 %v791, 0.0
        %v990 = vmax.f32 %v796, 0.0
        %v991 = vmax.f32 %v799, 0.0
        %v992 = vmax.f32 %v804, 0.0
        %v993 = vmax.f32 %v807, 0.0
        %v994 = vmax.f32 %v812, 0.0
        %v995 = vmax.f32 %v815, 0.0
        %v996 = vmax.f32 %v820, 0.0
        %v997 = vmax.f32 %v823, 0.0
        %v998 = vmax.f32 %v828, 0.0
        %v999 = vmax.f32 %v831, 0.0
        %v1000 = vmax.f32 %v836, 0.0
        %v1001 = vmax.f32 %v839, 0.0
        %v1002 = vmax.f32 %v844, 0.0
        %v1003 = vmax.f32 %v847, 0.0
        %v1004 = vmax.f32 %v852, 0.0
        %v1005 = vmax.f32 %v855, 0.0
        %v1006 = vmax.f32 %v860, 0.0
        %v1007 = vmax.f32 %v863, 0.0
        %v1008 = vmax.f32 %v868, 0.0
        %v1009 = vmax.f32 %v871, 0.0
        %v1010 = vmax.f32 %v876, 0.0
        %v1011 = vmax.f32 %v879, 0.0
        %v1012 = vmax.f32 %v884, 0.0
        %v1013 = vmax.f32 %v887, 0.0
        %v1014 = vmax.f32 %v892, 0.0
        %v1015 = vmax.f32 %v895, 0.0
        %v1016 = vmax.f32 %v900, 0.0
        %v1017 = vmax.f32 %v903, 0.0
        %v1018 = vmax.f32 %v908, 0.0
        %v1019 = vmax.f32 %v911, 0.0
        %v1020 = vmax.f32 %v916, 0.0
        %v1021 = vmax.f32 %v919, 0.0
        %v1022 = vmax.f32 %v924, 0.0
        %v1023 = vmax.f32 %v927, 0.0
        %v1024 = vmax.f32 %v932, 0.0
        %v1025 = vmax.f32 %v935, 0.0
        %v1026 = vmax.f32 %v940, 0.0
        %v1027 = vmax.f32 %v943, 0.0
        %v1028 = vmax.f32 %v948, 0.0
        %v1029 = vmax.f32 %v951, 0.0
        %v1030 = vmax.f32 %v956, 0.0
        %v1031 = vmax.f32 %v959, 0.0
        %v1032 = vmax.f32 %v964, 0.0
        %v1033 = vmax.f32 %v967, 0.0
        %v1034 = vld [vmem:[#allocation2] sm:$0xff]
        %v1035 = vadd.f32 %v970, %v971
        %v1036 = vadd.f32 %v1035, %v972
        %v1037 = vadd.f32 %v1036, %v973
        %v1038 = vadd.f32 %v1037, %v974
        %v1039 = vadd.f32 %v1038, %v975
        %v1040 = vadd.f32 %v1039, %v976
        %v1041 = vadd.f32 %v1040, %v977
        %v1042 = vadd.f32 %v1041, %v978
        %v1043 = vadd.f32 %v1042, %v979
        %v1044 = vadd.f32 %v1043, %v980
        %v1045 = vadd.f32 %v1044, %v981
        %v1046 = vadd.f32 %v1045, %v982
        %v1047 = vadd.f32 %v1046, %v983
        %v1048 = vadd.f32 %v1047, %v984
        %v1049 = vadd.f32 %v1048, %v985
        %v1050 = vadd.f32 %v1049, %v986
        %v1051 = vadd.f32 %v1050, %v987
        %v1052 = vadd.f32 %v1051, %v988
        %v1053 = vadd.f32 %v1052, %v989
        %v1054 = vadd.f32 %v1053, %v990
        %v1055 = vadd.f32 %v1054, %v991
        %v1056 = vadd.f32 %v1055, %v992
        %v1057 = vadd.f32 %v1056, %v993
        %v1058 = vadd.f32 %v1057, %v994
        %v1059 = vadd.f32 %v1058, %v995
        %v1060 = vadd.f32 %v1059, %v996
        %v1061 = vadd.f32 %v1060, %v997
        %v1062 = vadd.f32 %v1061, %v998
        %v1063 = vadd.f32 %v1062, %v999
        %v1064 = vadd.f32 %v1063, %v1000
        %v1065 = vadd.f32 %v1064, %v1001
        %v1066 = vadd.f32 %v1065, %v1002
        %v1067 = vadd.f32 %v1066, %v1003
        %v1068 = vadd.f32 %v1067, %v1004
        %v1069 = vadd.f32 %v1068, %v1005
        %v1070 = vadd.f32 %v1069, %v1006
        %v1071 = vadd.f32 %v1070, %v1007
        %v1072 = vadd.f32 %v1071, %v1008
        %v1073 = vadd.f32 %v1072, %v1009
        %v1074 = vadd.f32 %v1073, %v1010
        %v1075 = vadd.f32 %v1074, %v1011
        %v1076 = vadd.f32 %v1075, %v1012
        %v1077 = vadd.f32 %v1076, %v1013
        %v1078 = vadd.f32 %v1077, %v1014
        %v1079 = vadd.f32 %v1078, %v1015
        %v1080 = vadd.f32 %v1079, %v1016
        %v1081 = vadd.f32 %v1080, %v1017
        %v1082 = vadd.f32 %v1081, %v1018
        %v1083 = vadd.f32 %v1082, %v1019
        %v1084 = vadd.f32 %v1083, %v1020
        %v1085 = vadd.f32 %v1084, %v1021
        %v1086 = vadd.f32 %v1085, %v1022
        %v1087 = vadd.f32 %v1086, %v1023
        %v1088 = vadd.f32 %v1087, %v1024
        %v1089 = vadd.f32 %v1088, %v1025
        %v1090 = vadd.f32 %v1089, %v1026
        %v1091 = vadd.f32 %v1090, %v1027
        %v1092 = vadd.f32 %v1091, %v1028
        %v1093 = vadd.f32 %v1092, %v1029
        %v1094 = vadd.f32 %v1093, %v1030
        %v1095 = vadd.f32 %v1094, %v1031
        %v1096 = vadd.f32 %v1095, %v1032
        %v1097 = vadd.f32 %v1096, %v1033
        %v1098 = vadd.f32 %v1034, %v1097
        %1099 = vst [vmem:[#allocation2] sm:$0xff] %v1098
        %p1100 = scmp.eq.s32.totalorder %s24, 1
        // Predicated region
        $region45: #{tpu_custom_call.1} parent=39 // pred_check
          %p1101 = pneg %p1100
        $region46: #{tpu_custom_call.1} parent=39 // pred_check_branch
          %1103 = sbr.rel (%p1101) target = $region48
        $region47: #{tpu_custom_call.1} parent=39 // pred_region
          %v1104 = vld [vmem:[#allocation2] sm:$0xff]
          %v1105 = vrot.slane %v1104, 4
          %v1106 = vadd.f32 %v1104, %v1105
          %v1107 = vrot.slane %v1106, 2
          %v1108 = vadd.f32 %v1106, %v1107
          %v1109 = vrot.slane %v1108, 1
          %v1110 = vadd.f32 %v1108, %v1109
          %v1111 = vld [vmem:[%s2] sm:$0x1]
          %v1112 = vmax.f32 %v1111, 0.0
          %v1113 = vmul.f32 %v1112, 63.0
          %v1114 = vsub.f32 %v1110, %v1113
          %v1115 = vmul.f32 %v1114, 0.0010405828
          %v1116 = vld [vmem:[%s3] sm:$0xff]
          %v1117 = vld [vmem:[%s3 + $0x8] sm:$0xff]
          %v1118 = vld [vmem:[%s3 + $0x10] sm:$0xff]
          %v1119 = vld [vmem:[%s3 + $0x18] sm:$0xff]
          %v1120 = vld [vmem:[%s3 + $0x20] sm:$0xff]
          %v1121 = vld [vmem:[%s3 + $0x28] sm:$0xff]
          %v1122 = vld [vmem:[%s3 + $0x30] sm:$0xff]
          %v1123 = vld [vmem:[%s3 + $0x38] sm:$0xff]
          %v1124 = vld [vmem:[%s3 + $0x40] sm:$0xff]
          %v1125 = vld [vmem:[%s3 + $0x48] sm:$0xff]
          %v1126 = vld [vmem:[%s3 + $0x50] sm:$0xff]
          %v1127 = vld [vmem:[%s3 + $0x58] sm:$0xff]
          %v1128 = vld [vmem:[%s3 + $0x60] sm:$0xff]
          %v1129 = vld [vmem:[%s3 + $0x68] sm:$0xff]
          %v1130 = vld [vmem:[%s3 + $0x70] sm:$0xff]
          %v1131 = vld [vmem:[%s3 + $0x78] sm:$0xff]
          %v1132 = vld [vmem:[%s4] sm:$0x1]
          %1133 = vmatprep.subr.mxu0 0.0
          %1134 = vmatpush1.msra.mxu0 %v1116
          %1135 = vmatprep.subr.mxu0 0.0
          %1136 = vmatpush1.msra.mxu0 %v1117
          %1137 = vmatprep.subr.mxu0 0.0
          %1138 = vmatpush1.msra.mxu0 %v1118
          %1139 = vmatprep.subr.mxu0 0.0
          %1140 = vmatpush1.msra.mxu0 %v1119
          %1141 = vmatprep.subr.mxu0 0.0
          %1142 = vmatpush1.msra.mxu0 %v1120
          %1143 = vmatprep.subr.mxu0 0.0
          %1144 = vmatpush1.msra.mxu0 %v1121
          %1145 = vmatprep.subr.mxu0 0.0
          %1146 = vmatpush1.msra.mxu0 %v1122
          %1147 = vmatprep.subr.mxu0 0.0
          %1148 = vmatpush1.msra.mxu0 %v1123
          %1149 = vmatprep.subr.mxu0 0.0
          %1150 = vmatpush1.msra.mxu0 %v1124
          %1151 = vmatprep.subr.mxu0 0.0
          %1152 = vmatpush1.msra.mxu0 %v1125
          %1153 = vmatprep.subr.mxu0 0.0
          %1154 = vmatpush1.msra.mxu0 %v1126
          %1155 = vmatprep.subr.mxu0 0.0
          %1156 = vmatpush1.msra.mxu0 %v1127
          %1157 = vmatprep.subr.mxu0 0.0
          %1158 = vmatpush1.msra.mxu0 %v1128
          %1159 = vmatprep.subr.mxu0 0.0
          %1160 = vmatpush1.msra.mxu0 %v1129
          %1161 = vmatprep.subr.mxu0 0.0
          %1162 = vmatpush1.msra.mxu0 %v1130
          %1163 = vmatprep.subr.mxu0 0.0
          %1164 = vmatpush1.msra.mxu0 %v1131
          %1165 = vmatprep.subr.mxu0 0.0
          %1166 = vmatpush1.msra.mxu0 0.0
          %1167 = vmatprep.subr.mxu0 0.0
          %1168 = vmatpush1.msra.mxu0 0.0
          %1169 = vmatprep.subr.mxu0 0.0
          %1170 = vmatpush1.msra.mxu0 0.0
          %1171 = vmatprep.subr.mxu0 0.0
          %1172 = vmatpush1.msra.mxu0 0.0
          %1173 = vmatprep.subr.mxu0 0.0
          %1174 = vmatpush1.msra.mxu0 0.0
          %1175 = vmatprep.subr.mxu0 0.0
          %1176 = vmatpush1.msra.mxu0 0.0
          %1177 = vmatprep.subr.mxu0 0.0
          %1178 = vmatpush1.msra.mxu0 0.0
          %1179 = vmatprep.subr.mxu0 0.0
          %1180 = vmatpush1.msra.mxu0 0.0
          %1181 = vmatprep.subr.mxu0 0.0
          %1182 = vmatpush1.msra.mxu0 0.0
          %1183 = vmatprep.subr.mxu0 0.0
          %1184 = vmatpush1.msra.mxu0 0.0
          %1185 = vmatprep.subr.mxu0 0.0
          %1186 = vmatpush1.msra.mxu0 0.0
          %1187 = vmatprep.subr.mxu0 0.0
          %1188 = vmatpush1.msra.mxu0 0.0
          %1189 = vmatprep.subr.mxu0 0.0
          %1190 = vmatpush1.msra.mxu0 0.0
          %1191 = vmatprep.subr.mxu0 0.0
          %1192 = vmatpush1.msra.mxu0 0.0
          %1193 = vmatprep.subr.mxu0 0.0
          %1194 = vmatpush1.msra.mxu0 0.0
          %1195 = vmatprep.subr.mxu0 0.0
          %1196 = vmatpush1.msra.mxu0 0.0
          %1197 = vmatprep.mubr.f32.mxu0 0.0
          %1198 = vmatmul.mubr.f32.gmra.mrb[0].mxu0 %v1115
          %v1199 = vpop.f32.mrb[0].mxu0
          %v1200 = vadd.f32 %v1132, %v1199
          %v1201 = vpop.f32.mrb[0].mxu0
          %1202 = vdwg.mxu0
          %v1203 = vlaneseq
          %v1204 = vshrl.u32 %v1203, 7
          %v1205 = vsub.s32 0, %v1204
          %v1206 = vrot.slane %v1200, %v1205
          %1207 = vst [vmem:[%s240] sm:$0xff] %v1206
        $region48: #{tpu_custom_call.1} parent=39 // pred_fallthru
          _
        %s1208 = sand.u32 %s151, 1
        %s1209 = scalar_lea.sflag [#allocation5], %s1208
        %s1210 = sand.u32 %s151, 1
        %s1211 = smul.addr %s1210, 8
        %s1212 = scalar_lea.vmem [#allocation4], %s1211
        // Predicated region
        $region49: #{tpu_custom_call.1} parent=39 // pred_check
          %p1213 = pneg %p161
        $region50: #{tpu_custom_call.1} parent=39 // pred_check_branch
          %1215 = sbr.rel (%p1213) target = $region52
        $region51: #{tpu_custom_call.1} parent=39 // pred_region
          %s1217 = ssub.s32 128, 128
          %1218 = vsyncadd %s1209, %s1217
          %s1219 = smul.addr %s23, 128
          %s1220 = scalar_lea.hbm %s5, %s1219
          %s1222 = sshll.u32 %s1212, 4
          %s1223 = int_to_ptr.vmem [resolvable:$true] %s1222
          %1225 = dma.vmem_to_hbm [thread:$0]  %s1223, 128, %s1220, %s1209
        $region52: #{tpu_custom_call.1} parent=39 // pred_fallthru
          _
      $region40: #{tpu_custom_call.1} parent=5 // pred_fallthru
        _
      %p1226 = scmp.le.s32.totalorder 2, %s14
      // Predicated region
      $region53: #{tpu_custom_call.1} parent=5 // pred_check
        %p1227 = pneg %p1226
      $region54: #{tpu_custom_call.1} parent=5 // pred_check_branch
        %1229 = sbr.rel (%p1227) target = $region56
      $region55: #{tpu_custom_call.1} parent=5 // pred_region
        %s1230 = ssub.s32 %s14, 2
        // Predicated region
        $region57: #{tpu_custom_call.1} parent=55 // pred_check
          %p1231 = pneg %p167
        $region58: #{tpu_custom_call.1} parent=55 // pred_check_branch
          %1233 = sbr.rel (%p1231) target = $region60
        $region59: #{tpu_custom_call.1} parent=55 // pred_region
          %s1234 = sand.u32 %s152, 1
          %s1235 = scalar_lea.sflag [#allocation5], %s1234
          %s1236 = sand.u32 %s152, 1
          %s1237 = smul.addr %s1236, 8
          %s1238 = scalar_lea.vmem [#allocation4], %s1237
          %1239 = dma.done %s1235, 128
        $region60: #{tpu_custom_call.1} parent=55 // pred_fallthru
          _
      $region56: #{tpu_custom_call.1} parent=5 // pred_fallthru
        _
    $region6: #{tpu_custom_call.1} parent=1 // loop_footer
      %s18 = sadd.s32 1, %s14
    $region7: #{tpu_custom_call.1} parent=1 // loop_footer_branch
      %13 = sbr.rel target = $region3
    $region8: #{tpu_custom_call.1} parent=1 // loop_exit
      _
    %1240 = vsyncpa [#allocation5], 1
    %s1241 = scalar_lea.sflag [#allocation5], 1
    %1242 = vsyncpa %s1241, 1

</llo_original>
